<compile_context>
chip_gen: v7x
topology: tpu7x:2x2x1
jax: 0.10.0
libtpu: 0.0.40
codegen_flags: <defaults>
</compile_context>

<pallas_src>
import math

import jax
import jax.numpy as jnp
from jax.experimental import pallas as pl
from jax.experimental.pallas import tpu as pltpu


def _copy_kernel(x_ref, o_ref):
    # Identity copy of one lane-dense tile (pure DMA-bound; no compute).
    o_ref[...] = x_ref[...]


_LANE_CANDIDATES = (4096, 2048, 1024, 512, 256, 128)  # lane widths to try


def _round_up(n: int, m: int) -> int:
    return ((n + m - 1) // m) * m


def _sublane_multiple(dtype) -> int:
    # Sub-32-bit dtypes pack along sublanes: keep full packed sublanes so the
    # tiles stay unmasked (8 rows f32, 16 rows bf16, 32 rows int8/fp8).
    return max(8, 32 // max(1, jnp.dtype(dtype).itemsize))


def _vmem_limits():
    """(scoped_vmem_limit_bytes, target_tile_bytes) for this TPU generation."""
    try:
        phys = int(pltpu.get_tpu_info().vmem_capacity_bytes)
    except Exception:
        phys = 64 * 1024 * 1024  # conservative (v7x-sized) default
    # Keep the scoped limit well below physical VMEM; the pipeline holds
    # ~4 tiles live (double-buffered input + output), so tile ~= scoped / 6.
    scoped = min(3 * phys // 4, 64 * 1024 * 1024)   # 64 MiB v5e/v6e, 48 MiB v7x
    tile = min(scoped // 6, 16 * 1024 * 1024)        # ~10.6 MiB / 8 MiB
    return scoped, tile


def _choose_lane_width(total: int, sub: int):
    """Largest lane width (multiple of 128) dividing `total`, preferring a
    row count that is a multiple of the packed sublane count."""
    for lanes in _LANE_CANDIDATES:
        if total % lanes == 0 and (total // lanes) % sub == 0:
            return lanes
    for lanes in _LANE_CANDIDATES:
        if total % lanes == 0:
            return lanes
    return None


def _materializing_copy(x: jax.Array, *, donate: bool) -> jax.Array:
    """Byte-exact copy of `x`, returned flat (metadata reshape done by caller)."""
    total = int(x.size)
    dtype = x.dtype
    itemsize = jnp.dtype(dtype).itemsize
    sub = _sublane_multiple(dtype)
    scoped_vmem, target_tile_bytes = _vmem_limits()

    # Only alias when the caller actually donates the input; otherwise XLA
    # would insert a defensive full copy of x before the kernel.
    alias = {0: 0} if donate else {}
    cost = pl.CostEstimate(flops=0, transcendentals=0,
                           bytes_accessed=2 * total * itemsize)

    lanes = _choose_lane_width(total, sub)
    if lanes is None:
        # Oddly-sized totals (not a multiple of 128): tiled flat 1-D copy,
        # ragged final block handled by Pallas masking.
        # TODO(synk): route this through a direct HBM->HBM make_async_copy.
        flat = x.reshape(total)
        chunk = max(1024, (target_tile_bytes // itemsize) // 1024 * 1024)
        chunk = min(chunk, _round_up(total, 1024))
        return pl.pallas_call(
            _copy_kernel,
            out_shape=jax.ShapeDtypeStruct((total,), dtype),
            grid=(pl.cdiv(total, chunk),),
            in_specs=[pl.BlockSpec((chunk,), lambda i: (i,))],
            out_specs=pl.BlockSpec((chunk,), lambda i: (i,)),
            input_output_aliases=alias,
            cost_estimate=cost,
            compiler_params=pltpu.CompilerParams(
                dimension_semantics=("parallel",),
                vmem_limit_bytes=scoped_vmem),
        )(flat)

    rows = total // lanes
    # ~target_tile_bytes per tile, rows-per-tile a multiple of the packed
    # sublane count, never (much) taller than the array.
    tile_rows = max(sub, (target_tile_bytes // (lanes * itemsize)) // sub * sub)
    tile_rows = min(tile_rows, _round_up(rows, sub))

    x2 = x.reshape(rows, lanes)  # metadata-only, row-major
    grid = (pl.cdiv(rows, tile_rows),)

    # TODO(synk): on v7x, pltpu.CORE_PARALLEL on this axis (or pl.core_map)
    # would split the stream across both TensorCores' DMA queues.
    y2 = pl.pallas_call(
        _copy_kernel,
        out_shape=jax.ShapeDtypeStruct((rows, lanes), dtype),
        grid=grid,
        in_specs=[pl.BlockSpec((tile_rows, lanes), lambda i: (i, 0))],
        out_specs=pl.BlockSpec((tile_rows, lanes), lambda i: (i, 0)),
        input_output_aliases=alias,
        cost_estimate=cost,
        compiler_params=pltpu.CompilerParams(
            dimension_semantics=("parallel",),
            vmem_limit_bytes=scoped_vmem),
    )(x2)
    return y2.reshape(total)


def reshape_pallas(x: jax.Array, shape, *,
                   force_copy: bool = False, donate: bool = False) -> jax.Array:
    """Equivalent of torch `x.view((-1, *shape))`.

    Default path is metadata-only (no kernel, no HBM traffic), matching torch
    .view semantics exactly.  `force_copy=True` materializes the result with
    the lane-dense Pallas copy kernel; set `donate=True` only if the caller
    actually donates `x` (enables in-place input->output aliasing).
    """
    shape = tuple(int(s) for s in shape)
    total = int(x.size)
    tail = math.prod(shape) if shape else 1
    assert total % tail == 0, "input numel not divisible by prod(shape)"
    batch = total // tail
    out_shape = (batch, *shape)

    if not force_copy:
        # Row-major reshape is metadata-only in XLA too: skip the copy.
        return x.reshape(out_shape)

    return _materializing_copy(x, donate=donate).reshape(out_shape)


if __name__ == "__main__":
    key = jax.random.PRNGKey(0)
    # NCHW activation (2, 4, 16, 16) reshaped to (-1, 4, 256),
    # mirroring Reshape(shape=(4, 256)).
    x = jax.random.normal(key, (2, 4, 16, 16), dtype=jnp.float32)
    target_shape = (4, 256)
    ref = x.reshape((-1, *target_shape))

    # Default (metadata-only) path — matches torch .view with zero HBM traffic.
    out_fast = reshape_pallas(x, target_shape)
    jax.block_until_ready(out_fast)
    assert out_fast.shape == ref.shape and out_fast.dtype == ref.dtype
    assert bool(jnp.array_equal(out_fast, ref))

    # Materializing Pallas copy path (small case, single tile).
    out_copy = reshape_pallas(x, target_shape, force_copy=True)
    jax.block_until_ready(out_copy)
    assert out_copy.shape == ref.shape and out_copy.dtype == ref.dtype
    assert bool(jnp.array_equal(out_copy, ref))

    # Larger case exercising the multi-tile, lane-dense copy path (grid > 1
    # on all generations: 16 MiB of f32 vs ~8-11 MiB tiles).
    x_big = jax.random.normal(jax.random.PRNGKey(1), (16, 64, 64, 64),
                              dtype=jnp.float32)
    ref_big = x_big.reshape((-1, 64, 64 * 64))
    out_big = reshape_pallas(x_big, (64, 64 * 64), force_copy=True)
    jax.block_until_ready(out_big)
    assert out_big.shape == ref_big.shape
    assert bool(jnp.array_equal(out_big, ref_big))

    print("KERNEL_OK")
</pallas_src>

<mosaic_0001>
module attributes {stable_mosaic.version = 11 : i64} {
  func.func @_copy_kernel(%arg0: i32, %arg1: memref<8x256xf32, #tpu.memory_space<vmem>>, %arg2: memref<8x256xf32, #tpu.memory_space<vmem>>) attributes {dimension_semantics = [#tpu.dimension_semantics<parallel>], iteration_bounds = array<i64: 1>, scalar_prefetch = 0 : i64, scratch_operands = 0 : i64, tpu.core_type = #tpu.core_type<tc>, window_params = [{transform_indices = @transform_0, window_bounds = array<i64: 8, 256>}, {transform_indices = @transform_1, window_bounds = array<i64: 8, 256>}]} {
    %c0 = arith.constant 0 : index
    %c0_0 = arith.constant 0 : index
    %0 = vector.load %arg1[%c0, %c0_0] : memref<8x256xf32, #tpu.memory_space<vmem>>, vector<8x256xf32>
    %c0_1 = arith.constant 0 : index
    %c0_2 = arith.constant 0 : index
    %1 = vector.load %arg2[%c0_1, %c0_2] : memref<8x256xf32, #tpu.memory_space<vmem>>, vector<8x256xf32>
    tpu.vector_store %arg2[%c0_1, %c0_2], %0 {strides = array<i32>} : memref<8x256xf32, #tpu.memory_space<vmem>>, vector<8x256xf32>,
    return
  }
  func.func @transform_0(%arg0: i32) -> (i32, i32) {
    %c0_i32 = arith.constant 0 : i32
    %c0_i32_0 = arith.constant 0 : i32
    return %arg0, %c0_i32 : i32, i32
  }
  func.func @transform_1(%arg0: i32) -> (i32, i32) {
    %c0_i32 = arith.constant 0 : i32
    %c0_i32_0 = arith.constant 0 : i32
    return %arg0, %c0_i32 : i32, i32
  }
}

</mosaic_0001>

<llo_original>
// kernel: tpu_custom_call.1
$region0: #{tpu_custom_call.1}
  #allocation0 [shape = 'u32[]', space=smem, size = 0x4, offset = 0x4, fixed_abs, tag = 'smem constant byte address 0x4 - core index']
  #allocation1 [shape = 'u32[144,128]{1,0:T(1,128)}', space=vmem, size = 0x12000, scoped, tag = 'internal scratch']
  %s0 = inlined_call_operand.hbm [shape: f32[8,256], index: 0, kind: input, shape index: {}]
  %s1 = inlined_call_operand.hbm [shape: f32[8,256], index: 1, kind: output, shape index: {}]
  %s2 = sld [smem:[#allocation0]]
  $region18: #{tpu_custom_call.1} parent=0
    _
  %s4 = ssub.s32 1, %s2
  %s5 = scalar_select 0, %s4, %s2
  $region1: #{tpu_custom_call.1} parent=0
    #allocation2 [shape = 'u8[8192]{0}', space=vmem, size = 0x2000, scoped, tag = 'input window, operand 0, single buffered']
    #allocation3 [shape = 's32[1]{0}', space=sflag, size = 0x4, scoped, tag = 'scoped memory for tpu_custom_call.1']
    #allocation4 [shape = 's32[1]{0}', space=sflag, size = 0x4, scoped, tag = 'scoped memory for tpu_custom_call.1']
    #allocation5 [shape = 'u8[8192]{0}', space=vmem, size = 0x2000, scoped, tag = 'output window, operand 0, single buffered']
    %6 = vsyncpa [#allocation3], 0
    %7 = vsyncpa [#allocation4], 0
    // Predicated region
    $region2: #{tpu_custom_call.1} parent=1 // pred_check
      _
    $region3: #{tpu_custom_call.1} parent=1 // pred_check_branch
      %9 = sbr.rel (0) target = $region5
    $region4: #{tpu_custom_call.1} parent=1 // pred_region
      %s11 = ssub.s32 256, 256
      %12 = vsyncadd [#allocation3], %s11
      %s14 = sshll.u32 [#allocation2], 4
      %s15 = int_to_ptr.vmem [resolvable:$true] %s14
      %17 = dma.hbm_to_vmem [thread:$0]  %s0, 256, %s15, [#allocation3]
    $region5: #{tpu_custom_call.1} parent=1 // pred_fallthru
      _
    // Predicated region
    $region6: #{tpu_custom_call.1} parent=1 // pred_check
      _
    $region7: #{tpu_custom_call.1} parent=1 // pred_check_branch
      %19 = sbr.rel (0) target = $region9
    $region8: #{tpu_custom_call.1} parent=1 // pred_region
      %20 = dma.done [#allocation3], 256
    $region9: #{tpu_custom_call.1} parent=1 // pred_fallthru
      _
    %v21 = vld [vmem:[#allocation2] sm:$0xff]
    %v22 = vld [vmem:[#allocation2 + $0x8] sm:$0xff]
    %23 = vst [vmem:[#allocation5] sm:$0xff] %v21
    %24 = vst [vmem:[#allocation5 + $0x8] sm:$0xff] %v22
    // Predicated region
    $region10: #{tpu_custom_call.1} parent=1 // pred_check
      _
    $region11: #{tpu_custom_call.1} parent=1 // pred_check_branch
      %26 = sbr.rel (0) target = $region13
    $region12: #{tpu_custom_call.1} parent=1 // pred_region
      %s28 = ssub.s32 256, 256
      %29 = vsyncadd [#allocation4], %s28
      %s31 = sshll.u32 [#allocation5], 4
      %s32 = int_to_ptr.vmem [resolvable:$true] %s31
      %34 = dma.vmem_to_hbm [thread:$0]  %s32, 256, %s1, [#allocation4]
    $region13: #{tpu_custom_call.1} parent=1 // pred_fallthru
      _
    // Predicated region
    $region14: #{tpu_custom_call.1} parent=1 // pred_check
      _
    $region15: #{tpu_custom_call.1} parent=1 // pred_check_branch
      %36 = sbr.rel (0) target = $region17
    $region16: #{tpu_custom_call.1} parent=1 // pred_region
      %37 = dma.done [#allocation4], 256
    $region17: #{tpu_custom_call.1} parent=1 // pred_fallthru
      _
    %38 = vsyncpa [#allocation3], 1
    %39 = vsyncpa [#allocation4], 1

</llo_original>
